<compile_context>
chip_gen: v7x
topology: tpu7x:2x2x1
jax: 0.10.0
libtpu: 0.0.40
codegen_flags: <defaults>
</compile_context>

<pallas_src>
import jax
import jax.numpy as jnp
from jax import lax
from jax.experimental import pallas as pl
from jax.experimental.pallas import tpu as pltpu


def _graph_dmd_kernel(x_ref, w_ref, b_ref, g_ref, o_ref):
    # x_ref : [gb, N*F]   one row per graph, node-major/feature-minor lanes
    # w_ref : [N*F, N*C]  fused operator kron(M^T, Wc)
    # b_ref : [1,  N*C]   effective bias, node-major/class-minor lanes
    # g_ref : [N*C, N*C]  class-group summing matrix kron(I_N, ones(C,C))
    # o_ref : [gb, N*C]   log-softmax scores (flattened; caller reshapes to [., N, C])

    # (1) Entire linear forward as ONE lane-dense MXU matmul.
    logits = jnp.dot(x_ref[...], w_ref[...],
                     preferred_element_type=jnp.float32) + b_ref[...]

    # (2) Per-node log_softmax over the C-lane class groups, kept 2-D and lane-dense.
    #     shift is constant within every class group, so  (logits-shift) - log(sum exp(logits-shift))
    #     equals the exact per-node log-softmax (breaks only if the within-row spread > ~87).
    shift = jnp.max(logits, axis=-1, keepdims=True)          # [gb, 1]   (XLU)
    p = jnp.exp(logits - shift)                               # EUP
    denom = jnp.dot(p, g_ref[...],                            # group sums, broadcast per group
                    preferred_element_type=jnp.float32)       # [gb, N*C] (MXU)
    o_ref[...] = (logits - shift) - jnp.log(denom)


def _round_up(x, m):
    return -(-x // m) * m


def _num_parallel_tiles():
    # v7x has 2 TensorCores/chip worth splitting a "parallel" grid axis across;
    # on single-TC v5e/v6e extra grid steps are pure per-step overhead -> grid=(1,).
    try:
        kind = jax.devices()[0].device_kind.lower()
    except Exception:
        return 1
    return 2 if "v7" in kind else 1


def graph_dmd_fuse_params(phi, w_in, b_in, filters, w_out, b_out):
    """Parameter-only fusion. Call ONCE when Phi / weights change; reuse across forward calls."""
    f32 = jnp.float32
    hp = lax.Precision.HIGHEST
    phi = phi.astype(f32)
    filters = filters.astype(f32)
    n = phi.shape[0]
    f = w_in.shape[1]
    c = w_out.shape[0]

    m = jnp.matmul(phi * filters[None, :], phi.T, precision=hp)                 # [N, N]
    wc = jnp.matmul(w_in.T.astype(f32), w_out.T.astype(f32), precision=hp)      # [F, C]
    wob = jnp.matmul(w_out.astype(f32), b_in.astype(f32), precision=hp)         # [C]
    bias_eff = (jnp.sum(m, axis=1, keepdims=True) * wob[None, :]
                + b_out.astype(f32)[None, :])                                   # [N, C]

    w_kron = jnp.kron(m.T, wc)                                                  # [N*F, N*C]
    bias_flat = bias_eff.reshape(1, n * c)                                      # [1, N*C]
    gsum = jnp.kron(jnp.eye(n, dtype=f32), jnp.ones((c, c), f32))               # [N*C, N*C]
    return dict(w_kron=w_kron, bias_flat=bias_flat, gsum=gsum, n=n, f=f, c=c)


@jax.jit
def _graph_dmd_apply_jit(x, w_kron, bias_flat, gsum):
    b, n, f = x.shape
    c = bias_flat.shape[1] // n
    nf, nc = n * f, n * c

    num_tiles = max(1, min(_num_parallel_tiles(), b))
    gb = _round_up(-(-b // num_tiles), 8)          # rows per tile: multiple of 8 sublanes
    b_pad = gb * num_tiles

    x_flat = x.reshape(b, nf).astype(jnp.float32)  # lane-dense [B, N*F]
    if b_pad != b:
        x_flat = jnp.pad(x_flat, ((0, b_pad - b), (0, 0)))

    cost = pl.CostEstimate(
        flops=2 * b_pad * nf * nc + 2 * b_pad * nc * nc + 6 * b_pad * nc,
        transcendentals=2 * b_pad * nc,
        bytes_accessed=4 * (b_pad * nf + 2 * b_pad * nc
                            + num_tiles * (nf * nc + nc * nc + nc)),
    )

    out_flat = pl.pallas_call(
        _graph_dmd_kernel,
        out_shape=jax.ShapeDtypeStruct((b_pad, nc), jnp.float32),
        grid_spec=pltpu.PrefetchScalarGridSpec(
            num_scalar_prefetch=0,
            grid=(num_tiles,),
            in_specs=[
                pl.BlockSpec((gb, nf), lambda i: (i, 0)),     # graph-row tile of X
                pl.BlockSpec((nf, nc), lambda i: (0, 0)),     # W_kron (resident)
                pl.BlockSpec((1, nc), lambda i: (0, 0)),      # bias_flat
                pl.BlockSpec((nc, nc), lambda i: (0, 0)),     # group-sum matrix
            ],
            out_specs=pl.BlockSpec((gb, nc), lambda i: (i, 0)),
        ),
        compiler_params=pltpu.CompilerParams(
            dimension_semantics=("parallel",),
        ),
        cost_estimate=cost,
    )(x_flat, w_kron, bias_flat, gsum)

    return out_flat[:b].reshape(b, n, c)


def graph_dmd_apply(x, fused):
    """x: [B, N, F] (or [N, F]) sharing the fused Phi; returns log-softmax scores [B, N, C]."""
    n, f = fused["n"], fused["f"]
    squeeze = (x.ndim == 2)
    if squeeze:
        x = x[None]
    assert x.shape[1:] == (n, f), (x.shape, n, f)
    out = _graph_dmd_apply_jit(x, fused["w_kron"], fused["bias_flat"], fused["gsum"])
    return out[0] if squeeze else out


def graph_dmd_forward(x, phi, w_in, b_in, filters, w_out, b_out):
    """Convenience (un-cached) path: fuse parameters then apply. Prefer caching the fusion."""
    return graph_dmd_apply(x, graph_dmd_fuse_params(phi, w_in, b_in, filters, w_out, b_out))


if __name__ == "__main__":
    # Small shapes consistent with the module: B=32 graphs sharing Phi, N=16 nodes,
    # num_features=32, num_latent=32, num_classes=8, K=16 DMD modes.
    B, N, F, L, C, K = 32, 16, 32, 32, 8, 16
    key = jax.random.PRNGKey(0)
    k0, k1, k2, k3, k4, k5, k6 = jax.random.split(key, 7)

    x_b   = jax.random.normal(k0, (B, N, F), jnp.float32)
    phi   = jax.random.normal(k1, (N, K), jnp.float32)          # Phi (real part)
    lamb  = jax.random.normal(k2, (K,),   jnp.float32)          # filters = lamb_values.real
    w_in  = jax.random.normal(k3, (L, F), jnp.float32) * 0.1    # nn.Linear(F, L).weight
    b_in  = jax.random.normal(k4, (L,),   jnp.float32) * 0.1
    w_out = jax.random.normal(k5, (C, L), jnp.float32) * 0.1    # nn.Linear(L, C).weight
    b_out = jax.random.normal(k6, (C,),   jnp.float32) * 0.1

    # Parameter-only fusion: computed once, reused for every forward call.
    fused = graph_dmd_fuse_params(phi, w_in, b_in, lamb, w_out, b_out)

    out = graph_dmd_apply(x_b, fused)
    out = jax.block_until_ready(out)

    # Unfused plain-JAX reference (mirrors the PyTorch forward, dropout in eval mode).
    hp = jax.lax.Precision.HIGHEST

    def ref_one(xg):
        h = jnp.matmul(xg, w_in.T, precision=hp) + b_in
        t = jnp.matmul(phi.T, h, precision=hp)
        z = jnp.matmul(phi, lamb[:, None] * t, precision=hp)
        logits = jnp.matmul(z, w_out.T, precision=hp) + b_out
        return logits - jax.scipy.special.logsumexp(logits, axis=-1, keepdims=True)

    ref = jax.vmap(ref_one)(x_b)

    assert out.shape == (B, N, C)
    max_err = float(jnp.max(jnp.abs(out - ref)))
    assert jnp.allclose(out, ref, atol=2e-3), max_err

    print("KERNEL_OK")
</pallas_src>

<mosaic_0001>
module attributes {stable_mosaic.version = 11 : i64} {
  func.func @_graph_dmd_kernel(%arg0: i32, %arg1: memref<32x512xf32, #tpu.memory_space<vmem>>, %arg2: memref<512x128xf32, #tpu.memory_space<vmem>>, %arg3: memref<1x128xf32, #tpu.memory_space<vmem>>, %arg4: memref<128x128xf32, #tpu.memory_space<vmem>>, %arg5: memref<32x128xf32, #tpu.memory_space<vmem>>) attributes {dimension_semantics = [#tpu.dimension_semantics<parallel>], iteration_bounds = array<i64: 1>, scalar_prefetch = 0 : i64, scratch_operands = 0 : i64, tpu.core_type = #tpu.core_type<tc>, window_params = [{transform_indices = @transform_0, window_bounds = array<i64: 32, 512>}, {pipeline_mode = #tpu.pipeline_mode<synchronous>, transform_indices = @transform_1, window_bounds = array<i64: 512, 128>}, {pipeline_mode = #tpu.pipeline_mode<synchronous>, transform_indices = @transform_2, window_bounds = array<i64: 1, 128>}, {pipeline_mode = #tpu.pipeline_mode<synchronous>, transform_indices = @transform_3, window_bounds = array<i64: 128, 128>}, {transform_indices = @transform_4, window_bounds = array<i64: 32, 128>}]} {
    %c0 = arith.constant 0 : index
    %c0_0 = arith.constant 0 : index
    %0 = vector.load %arg1[%c0, %c0_0] : memref<32x512xf32, #tpu.memory_space<vmem>>, vector<32x512xf32>
    %c0_1 = arith.constant 0 : index
    %c0_2 = arith.constant 0 : index
    %1 = vector.load %arg2[%c0_1, %c0_2] : memref<512x128xf32, #tpu.memory_space<vmem>>, vector<512x128xf32>
    %cst = arith.constant dense<0.000000e+00> : vector<32x128xf32>
    %2 = tpu.matmul %0, %1, %cst {dimension_numbers = #tpu.dot_dimension_numbers<[1], [0], [0], [1], [0, 0, 1, 1], [], []>} : vector<32x512xf32>, vector<512x128xf32>, vector<32x128xf32> -> vector<32x128xf32>
    %c0_3 = arith.constant 0 : index
    %c0_4 = arith.constant 0 : index
    %3 = vector.load %arg3[%c0_3, %c0_4] : memref<1x128xf32, #tpu.memory_space<vmem>>, vector<1x128xf32>
    %4 = vector.broadcast %3 : vector<1x128xf32> to vector<32x128xf32>
    %5 = arith.addf %2, %4 : vector<32x128xf32>
    %cst_5 = arith.constant dense<0xFF800000> : vector<32xf32>
    %6 = vector.multi_reduction <maximumf>, %5, %cst_5 [1] : vector<32x128xf32> to vector<32xf32>
    %7 = vector.shape_cast %6 : vector<32xf32> to vector<32x1xf32>
    %8 = vector.broadcast %7 : vector<32x1xf32> to vector<32x128xf32>
    %9 = arith.subf %5, %8 : vector<32x128xf32>
    %10 = math.exp %9 : vector<32x128xf32>
    %c0_6 = arith.constant 0 : index
    %c0_7 = arith.constant 0 : index
    %11 = vector.load %arg4[%c0_6, %c0_7] : memref<128x128xf32, #tpu.memory_space<vmem>>, vector<128x128xf32>
    %cst_8 = arith.constant dense<0.000000e+00> : vector<32x128xf32>
    %12 = tpu.matmul %10, %11, %cst_8 {dimension_numbers = #tpu.dot_dimension_numbers<[1], [0], [0], [1], [0, 0, 1, 1], [], []>} : vector<32x128xf32>, vector<128x128xf32>, vector<32x128xf32> -> vector<32x128xf32>
    %13 = vector.broadcast %7 : vector<32x1xf32> to vector<32x128xf32>
    %14 = arith.subf %5, %13 : vector<32x128xf32>
    %15 = math.log %12 : vector<32x128xf32>
    %16 = arith.subf %14, %15 : vector<32x128xf32>
    %c0_9 = arith.constant 0 : index
    %c0_10 = arith.constant 0 : index
    %17 = vector.load %arg5[%c0_9, %c0_10] : memref<32x128xf32, #tpu.memory_space<vmem>>, vector<32x128xf32>
    tpu.vector_store %arg5[%c0_9, %c0_10], %16 {strides = array<i32>} : memref<32x128xf32, #tpu.memory_space<vmem>>, vector<32x128xf32>,
    return
  }
  func.func @transform_0(%arg0: i32) -> (i32, i32) {
    %c0_i32 = arith.constant 0 : i32
    %c0_i32_0 = arith.constant 0 : i32
    return %arg0, %c0_i32 : i32, i32
  }
  func.func @transform_1(%arg0: i32) -> (i32, i32) {
    %c0_i32 = arith.constant 0 : i32
    %c0_i32_0 = arith.constant 0 : i32
    %c0_i32_1 = arith.constant 0 : i32
    return %c0_i32, %c0_i32_0 : i32, i32
  }
  func.func @transform_2(%arg0: i32) -> (i32, i32) {
    %c0_i32 = arith.constant 0 : i32
    %c0_i32_0 = arith.constant 0 : i32
    %c0_i32_1 = arith.constant 0 : i32
    return %c0_i32, %c0_i32_0 : i32, i32
  }
  func.func @transform_3(%arg0: i32) -> (i32, i32) {
    %c0_i32 = arith.constant 0 : i32
    %c0_i32_0 = arith.constant 0 : i32
    %c0_i32_1 = arith.constant 0 : i32
    return %c0_i32, %c0_i32_0 : i32, i32
  }
  func.func @transform_4(%arg0: i32) -> (i32, i32) {
    %c0_i32 = arith.constant 0 : i32
    %c0_i32_0 = arith.constant 0 : i32
    return %arg0, %c0_i32 : i32, i32
  }
}

</mosaic_0001>

<llo_original>
// kernel: _graph_dmd_apply_jit.1
$region0: #{_graph_dmd_apply_jit.1}
  #allocation0 [shape = 'u32[]', space=smem, size = 0x4, offset = 0x4, fixed_abs, tag = 'smem constant byte address 0x4 - core index']
  #allocation1 [shape = 'u32[144,128]{1,0:T(1,128)}', space=vmem, size = 0x12000, scoped, tag = 'internal scratch']
  %s0 = inlined_call_operand.vmem [shape: f32[32,512], index: 0, kind: input, shape index: {}]
  %s1 = inlined_call_operand.vmem [shape: f32[512,128], index: 1, kind: input, shape index: {}]
  %s2 = inlined_call_operand.vmem [shape: f32[1,128], index: 2, kind: input, shape index: {}]
  %s3 = inlined_call_operand.vmem [shape: f32[128,128], index: 3, kind: input, shape index: {}]
  %s4 = inlined_call_operand.vmem [shape: f32[32,128], index: 4, kind: output, shape index: {}]
  %s5 = sld [smem:[#allocation0]]
  $region26: #{_graph_dmd_apply_jit.1} parent=0
    _
  %s7 = ssub.s32 1, %s5
  %s8 = scalar_select 0, %s7, %s5
  // Predicated region
  $region2: #{_graph_dmd_apply_jit.1} parent=0 // pred_check
    _
  $region3: #{_graph_dmd_apply_jit.1} parent=0 // pred_check_branch
    %10 = sbr.rel (0) target = $region5
  $region4: #{_graph_dmd_apply_jit.1} parent=0 // pred_region
    _
  $region5: #{_graph_dmd_apply_jit.1} parent=0 // pred_fallthru
    _
  // Predicated region
  $region6: #{_graph_dmd_apply_jit.1} parent=0 // pred_check
    _
  $region7: #{_graph_dmd_apply_jit.1} parent=0 // pred_check_branch
    %12 = sbr.rel (0) target = $region9
  $region8: #{_graph_dmd_apply_jit.1} parent=0 // pred_region
    _
  $region9: #{_graph_dmd_apply_jit.1} parent=0 // pred_fallthru
    _
  // Predicated region
  $region10: #{_graph_dmd_apply_jit.1} parent=0 // pred_check
    _
  $region11: #{_graph_dmd_apply_jit.1} parent=0 // pred_check_branch
    %14 = sbr.rel (0) target = $region13
  $region12: #{_graph_dmd_apply_jit.1} parent=0 // pred_region
    _
  $region13: #{_graph_dmd_apply_jit.1} parent=0 // pred_fallthru
    _
  // Predicated region
  $region14: #{_graph_dmd_apply_jit.1} parent=0 // pred_check
    _
  $region15: #{_graph_dmd_apply_jit.1} parent=0 // pred_check_branch
    %16 = sbr.rel (0) target = $region17
  $region16: #{_graph_dmd_apply_jit.1} parent=0 // pred_region
    _
  $region17: #{_graph_dmd_apply_jit.1} parent=0 // pred_fallthru
    _
  %v17 = vld [vmem:[%s0] sm:$0xff]
  %v18 = vld [vmem:[%s0 + $0x8] sm:$0xff]
  %v19 = vld [vmem:[%s0 + $0x10] sm:$0xff]
  %v20 = vld [vmem:[%s0 + $0x18] sm:$0xff]
  %v21 = vld [vmem:[%s0 + $0x20] sm:$0xff]
  %v22 = vld [vmem:[%s0 + $0x28] sm:$0xff]
  %v23 = vld [vmem:[%s0 + $0x30] sm:$0xff]
  %v24 = vld [vmem:[%s0 + $0x38] sm:$0xff]
  %v25 = vld [vmem:[%s0 + $0x40] sm:$0xff]
  %v26 = vld [vmem:[%s0 + $0x48] sm:$0xff]
  %v27 = vld [vmem:[%s0 + $0x50] sm:$0xff]
  %v28 = vld [vmem:[%s0 + $0x58] sm:$0xff]
  %v29 = vld [vmem:[%s0 + $0x60] sm:$0xff]
  %v30 = vld [vmem:[%s0 + $0x68] sm:$0xff]
  %v31 = vld [vmem:[%s0 + $0x70] sm:$0xff]
  %v32 = vld [vmem:[%s0 + $0x78] sm:$0xff]
  %v33 = vld [vmem:[%s1] sm:$0xff]
  %v34 = vld [vmem:[%s1 + $0x8] sm:$0xff]
  %v35 = vld [vmem:[%s1 + $0x10] sm:$0xff]
  %v36 = vld [vmem:[%s1 + $0x18] sm:$0xff]
  %v37 = vld [vmem:[%s1 + $0x20] sm:$0xff]
  %v38 = vld [vmem:[%s1 + $0x28] sm:$0xff]
  %v39 = vld [vmem:[%s1 + $0x30] sm:$0xff]
  %v40 = vld [vmem:[%s1 + $0x38] sm:$0xff]
  %v41 = vld [vmem:[%s1 + $0x40] sm:$0xff]
  %v42 = vld [vmem:[%s1 + $0x48] sm:$0xff]
  %v43 = vld [vmem:[%s1 + $0x50] sm:$0xff]
  %v44 = vld [vmem:[%s1 + $0x58] sm:$0xff]
  %v45 = vld [vmem:[%s1 + $0x60] sm:$0xff]
  %v46 = vld [vmem:[%s1 + $0x68] sm:$0xff]
  %v47 = vld [vmem:[%s1 + $0x70] sm:$0xff]
  %v48 = vld [vmem:[%s1 + $0x78] sm:$0xff]
  %v49 = vld [vmem:[%s1 + $0x80] sm:$0xff]
  %v50 = vld [vmem:[%s1 + $0x88] sm:$0xff]
  %v51 = vld [vmem:[%s1 + $0x90] sm:$0xff]
  %v52 = vld [vmem:[%s1 + $0x98] sm:$0xff]
  %v53 = vld [vmem:[%s1 + $0xa0] sm:$0xff]
  %v54 = vld [vmem:[%s1 + $0xa8] sm:$0xff]
  %v55 = vld [vmem:[%s1 + $0xb0] sm:$0xff]
  %v56 = vld [vmem:[%s1 + $0xb8] sm:$0xff]
  %v57 = vld [vmem:[%s1 + $0xc0] sm:$0xff]
  %v58 = vld [vmem:[%s1 + $0xc8] sm:$0xff]
  %v59 = vld [vmem:[%s1 + $0xd0] sm:$0xff]
  %v60 = vld [vmem:[%s1 + $0xd8] sm:$0xff]
  %v61 = vld [vmem:[%s1 + $0xe0] sm:$0xff]
  %v62 = vld [vmem:[%s1 + $0xe8] sm:$0xff]
  %v63 = vld [vmem:[%s1 + $0xf0] sm:$0xff]
  %v64 = vld [vmem:[%s1 + $0xf8] sm:$0xff]
  %v65 = vld [vmem:[%s1 + $0x100] sm:$0xff]
  %v66 = vld [vmem:[%s1 + $0x108] sm:$0xff]
  %v67 = vld [vmem:[%s1 + $0x110] sm:$0xff]
  %v68 = vld [vmem:[%s1 + $0x118] sm:$0xff]
  %v69 = vld [vmem:[%s1 + $0x120] sm:$0xff]
  %v70 = vld [vmem:[%s1 + $0x128] sm:$0xff]
  %v71 = vld [vmem:[%s1 + $0x130] sm:$0xff]
  %v72 = vld [vmem:[%s1 + $0x138] sm:$0xff]
  %v73 = vld [vmem:[%s1 + $0x140] sm:$0xff]
  %v74 = vld [vmem:[%s1 + $0x148] sm:$0xff]
  %v75 = vld [vmem:[%s1 + $0x150] sm:$0xff]
  %v76 = vld [vmem:[%s1 + $0x158] sm:$0xff]
  %v77 = vld [vmem:[%s1 + $0x160] sm:$0xff]
  %v78 = vld [vmem:[%s1 + $0x168] sm:$0xff]
  %v79 = vld [vmem:[%s1 + $0x170] sm:$0xff]
  %v80 = vld [vmem:[%s1 + $0x178] sm:$0xff]
  %v81 = vld [vmem:[%s1 + $0x180] sm:$0xff]
  %v82 = vld [vmem:[%s1 + $0x188] sm:$0xff]
  %v83 = vld [vmem:[%s1 + $0x190] sm:$0xff]
  %v84 = vld [vmem:[%s1 + $0x198] sm:$0xff]
  %v85 = vld [vmem:[%s1 + $0x1a0] sm:$0xff]
  %v86 = vld [vmem:[%s1 + $0x1a8] sm:$0xff]
  %v87 = vld [vmem:[%s1 + $0x1b0] sm:$0xff]
  %v88 = vld [vmem:[%s1 + $0x1b8] sm:$0xff]
  %v89 = vld [vmem:[%s1 + $0x1c0] sm:$0xff]
  %v90 = vld [vmem:[%s1 + $0x1c8] sm:$0xff]
  %v91 = vld [vmem:[%s1 + $0x1d0] sm:$0xff]
  %v92 = vld [vmem:[%s1 + $0x1d8] sm:$0xff]
  %v93 = vld [vmem:[%s1 + $0x1e0] sm:$0xff]
  %v94 = vld [vmem:[%s1 + $0x1e8] sm:$0xff]
  %v95 = vld [vmem:[%s1 + $0x1f0] sm:$0xff]
  %v96 = vld [vmem:[%s1 + $0x1f8] sm:$0xff]
  %v97 = vld [vmem:[%s2] sm:$0x1]
  %v99 = vlaneseq
  %v100 = vshrl.u32 %v99, 7
  %v101 = vsub.s32 0, %v100
  %v102 = vrot.slane %v97, %v101
  %104 = vmatprep.subr.mxu0 0.0
  %105 = vmatpush1.msra.mxu0 %v33
  %106 = vmatprep.subr.mxu0 0.0
  %107 = vmatpush1.msra.mxu0 %v34
  %108 = vmatprep.subr.mxu0 0.0
  %109 = vmatpush1.msra.mxu0 %v35
  %110 = vmatprep.subr.mxu0 0.0
  %111 = vmatpush1.msra.mxu0 %v36
  %112 = vmatprep.subr.mxu0 0.0
  %113 = vmatpush1.msra.mxu0 %v37
  %114 = vmatprep.subr.mxu0 0.0
  %115 = vmatpush1.msra.mxu0 %v38
  %116 = vmatprep.subr.mxu0 0.0
  %117 = vmatpush1.msra.mxu0 %v39
  %118 = vmatprep.subr.mxu0 0.0
  %119 = vmatpush1.msra.mxu0 %v40
  %120 = vmatprep.subr.mxu0 0.0
  %121 = vmatpush1.msra.mxu0 %v41
  %122 = vmatprep.subr.mxu0 0.0
  %123 = vmatpush1.msra.mxu0 %v42
  %124 = vmatprep.subr.mxu0 0.0
  %125 = vmatpush1.msra.mxu0 %v43
  %126 = vmatprep.subr.mxu0 0.0
  %127 = vmatpush1.msra.mxu0 %v44
  %128 = vmatprep.subr.mxu0 0.0
  %129 = vmatpush1.msra.mxu0 %v45
  %130 = vmatprep.subr.mxu0 0.0
  %131 = vmatpush1.msra.mxu0 %v46
  %132 = vmatprep.subr.mxu0 0.0
  %133 = vmatpush1.msra.mxu0 %v47
  %134 = vmatprep.subr.mxu0 0.0
  %135 = vmatpush1.msra.mxu0 %v48
  %136 = vmatprep.subr.mxu0 0.0
  %137 = vmatpush1.msra.mxu0 %v49
  %138 = vmatprep.subr.mxu0 0.0
  %139 = vmatpush1.msra.mxu0 %v50
  %140 = vmatprep.subr.mxu0 0.0
  %141 = vmatpush1.msra.mxu0 %v51
  %142 = vmatprep.subr.mxu0 0.0
  %143 = vmatpush1.msra.mxu0 %v52
  %144 = vmatprep.subr.mxu0 0.0
  %145 = vmatpush1.msra.mxu0 %v53
  %146 = vmatprep.subr.mxu0 0.0
  %147 = vmatpush1.msra.mxu0 %v54
  %148 = vmatprep.subr.mxu0 0.0
  %149 = vmatpush1.msra.mxu0 %v55
  %150 = vmatprep.subr.mxu0 0.0
  %151 = vmatpush1.msra.mxu0 %v56
  %152 = vmatprep.subr.mxu0 0.0
  %153 = vmatpush1.msra.mxu0 %v57
  %154 = vmatprep.subr.mxu0 0.0
  %155 = vmatpush1.msra.mxu0 %v58
  %156 = vmatprep.subr.mxu0 0.0
  %157 = vmatpush1.msra.mxu0 %v59
  %158 = vmatprep.subr.mxu0 0.0
  %159 = vmatpush1.msra.mxu0 %v60
  %160 = vmatprep.subr.mxu0 0.0
  %161 = vmatpush1.msra.mxu0 %v61
  %162 = vmatprep.subr.mxu0 0.0
  %163 = vmatpush1.msra.mxu0 %v62
  %164 = vmatprep.subr.mxu0 0.0
  %165 = vmatpush1.msra.mxu0 %v63
  %166 = vmatprep.subr.mxu0 0.0
  %167 = vmatpush1.msra.mxu0 %v64
  %168 = vmatprep.mubr.f32.mxu0 %v18
  %169 = vmatmul.mubr.f32.gmra.mrb[0].mxu0 %v17
  %v170 = vpop.f32.mrb[0].mxu0
  %v171 = vadd.f32 %v102, %v170
  %v172 = vpop.f32.mrb[0].mxu0
  %173 = vmatprep.mubr.f32.mxu0 %v22
  %174 = vmatmul.mubr.f32.gmra.mrb[0].mxu0 %v21
  %v175 = vpop.f32.mrb[0].mxu0
  %v176 = vadd.f32 %v102, %v175
  %v177 = vpop.f32.mrb[0].mxu0
  %178 = vmatprep.mubr.f32.mxu0 %v26
  %179 = vmatmul.mubr.f32.gmra.mrb[0].mxu0 %v25
  %v180 = vpop.f32.mrb[0].mxu0
  %v181 = vadd.f32 %v102, %v180
  %v182 = vpop.f32.mrb[0].mxu0
  %183 = vmatprep.mubr.f32.mxu0 %v30
  %184 = vmatmul.mubr.f32.gmra.mrb[0].mxu0 %v29
  %v185 = vpop.f32.mrb[0].mxu0
  %v186 = vadd.f32 %v102, %v185
  %v187 = vpop.f32.mrb[0].mxu0
  %188 = vdwg.mxu0
  %189 = vmatprep.subr.mxu0 0.0
  %190 = vmatpush1.msra.mxu0 %v65
  %191 = vmatprep.subr.mxu0 0.0
  %192 = vmatpush1.msra.mxu0 %v66
  %193 = vmatprep.subr.mxu0 0.0
  %194 = vmatpush1.msra.mxu0 %v67
  %195 = vmatprep.subr.mxu0 0.0
  %196 = vmatpush1.msra.mxu0 %v68
  %197 = vmatprep.subr.mxu0 0.0
  %198 = vmatpush1.msra.mxu0 %v69
  %199 = vmatprep.subr.mxu0 0.0
  %200 = vmatpush1.msra.mxu0 %v70
  %201 = vmatprep.subr.mxu0 0.0
  %202 = vmatpush1.msra.mxu0 %v71
  %203 = vmatprep.subr.mxu0 0.0
  %204 = vmatpush1.msra.mxu0 %v72
  %205 = vmatprep.subr.mxu0 0.0
  %206 = vmatpush1.msra.mxu0 %v73
  %207 = vmatprep.subr.mxu0 0.0
  %208 = vmatpush1.msra.mxu0 %v74
  %209 = vmatprep.subr.mxu0 0.0
  %210 = vmatpush1.msra.mxu0 %v75
  %211 = vmatprep.subr.mxu0 0.0
  %212 = vmatpush1.msra.mxu0 %v76
  %213 = vmatprep.subr.mxu0 0.0
  %214 = vmatpush1.msra.mxu0 %v77
  %215 = vmatprep.subr.mxu0 0.0
  %216 = vmatpush1.msra.mxu0 %v78
  %217 = vmatprep.subr.mxu0 0.0
  %218 = vmatpush1.msra.mxu0 %v79
  %219 = vmatprep.subr.mxu0 0.0
  %220 = vmatpush1.msra.mxu0 %v80
  %221 = vmatprep.subr.mxu0 0.0
  %222 = vmatpush1.msra.mxu0 %v81
  %223 = vmatprep.subr.mxu0 0.0
  %224 = vmatpush1.msra.mxu0 %v82
  %225 = vmatprep.subr.mxu0 0.0
  %226 = vmatpush1.msra.mxu0 %v83
  %227 = vmatprep.subr.mxu0 0.0
  %228 = vmatpush1.msra.mxu0 %v84
  %229 = vmatprep.subr.mxu0 0.0
  %230 = vmatpush1.msra.mxu0 %v85
  %231 = vmatprep.subr.mxu0 0.0
  %232 = vmatpush1.msra.mxu0 %v86
  %233 = vmatprep.subr.mxu0 0.0
  %234 = vmatpush1.msra.mxu0 %v87
  %235 = vmatprep.subr.mxu0 0.0
  %236 = vmatpush1.msra.mxu0 %v88
  %237 = vmatprep.subr.mxu0 0.0
  %238 = vmatpush1.msra.mxu0 %v89
  %239 = vmatprep.subr.mxu0 0.0
  %240 = vmatpush1.msra.mxu0 %v90
  %241 = vmatprep.subr.mxu0 0.0
  %242 = vmatpush1.msra.mxu0 %v91
  %243 = vmatprep.subr.mxu0 0.0
  %244 = vmatpush1.msra.mxu0 %v92
  %245 = vmatprep.subr.mxu0 0.0
  %246 = vmatpush1.msra.mxu0 %v93
  %247 = vmatprep.subr.mxu0 0.0
  %248 = vmatpush1.msra.mxu0 %v94
  %249 = vmatprep.subr.mxu0 0.0
  %250 = vmatpush1.msra.mxu0 %v95
  %251 = vmatprep.subr.mxu0 0.0
  %252 = vmatpush1.msra.mxu0 %v96
  %253 = vmatprep.mubr.f32.mxu0 %v20
  %254 = vmatmul.mubr.f32.gmra.mrb[0].mxu0 %v19
  %v255 = vpop.f32.mrb[0].mxu0
  %v256 = vadd.f32 %v171, %v255
  %v257 = vpop.f32.mrb[0].mxu0
  %258 = vmatprep.mubr.f32.mxu0 %v24
  %259 = vmatmul.mubr.f32.gmra.mrb[0].mxu0 %v23
  %v260 = vpop.f32.mrb[0].mxu0
  %v261 = vadd.f32 %v176, %v260
  %v262 = vpop.f32.mrb[0].mxu0
  %263 = vmatprep.mubr.f32.mxu0 %v28
  %264 = vmatmul.mubr.f32.gmra.mrb[0].mxu0 %v27
  %v265 = vpop.f32.mrb[0].mxu0
  %v266 = vadd.f32 %v181, %v265
  %v267 = vpop.f32.mrb[0].mxu0
  %268 = vmatprep.mubr.f32.mxu0 %v32
  %269 = vmatmul.mubr.f32.gmra.mrb[0].mxu0 %v31
  %v270 = vpop.f32.mrb[0].mxu0
  %v271 = vadd.f32 %v186, %v270
  %v272 = vpop.f32.mrb[0].mxu0
  %273 = vdwg.mxu0
  %274 = vmax.xlane.f32.xlu0 %v256
  %v275 = vpop.xlane.xlu0 %274
  %276 = vmax.xlane.f32.xlu0 %v261
  %v277 = vpop.xlane.xlu0 %276
  %278 = vmax.xlane.f32.xlu0 %v266
  %v279 = vpop.xlane.xlu0 %278
  %280 = vmax.xlane.f32.xlu0 %v271
  %v281 = vpop.xlane.xlu0 %280
  %v282 = vsub.f32 %v256, %v275
  %v283 = vsub.f32 %v261, %v277
  %v284 = vsub.f32 %v266, %v279
  %v285 = vsub.f32 %v271, %v281
  %v286 = vmul.f32 %v282, 1.442695
  %v287 = vpow.pop %v286
  %v288 = vmul.f32 %v283, 1.442695
  %v289 = vpow.pop %v288
  %v290 = vmul.f32 %v284, 1.442695
  %v291 = vpow.pop %v290
  %v292 = vmul.f32 %v285, 1.442695
  %v293 = vpow.pop %v292
  %v294 = vld [vmem:[%s3] sm:$0xff]
  %v295 = vld [vmem:[%s3 + $0x8] sm:$0xff]
  %v296 = vld [vmem:[%s3 + $0x10] sm:$0xff]
  %v297 = vld [vmem:[%s3 + $0x18] sm:$0xff]
  %v298 = vld [vmem:[%s3 + $0x20] sm:$0xff]
  %v299 = vld [vmem:[%s3 + $0x28] sm:$0xff]
  %v300 = vld [vmem:[%s3 + $0x30] sm:$0xff]
  %v301 = vld [vmem:[%s3 + $0x38] sm:$0xff]
  %v302 = vld [vmem:[%s3 + $0x40] sm:$0xff]
  %v303 = vld [vmem:[%s3 + $0x48] sm:$0xff]
  %v304 = vld [vmem:[%s3 + $0x50] sm:$0xff]
  %v305 = vld [vmem:[%s3 + $0x58] sm:$0xff]
  %v306 = vld [vmem:[%s3 + $0x60] sm:$0xff]
  %v307 = vld [vmem:[%s3 + $0x68] sm:$0xff]
  %v308 = vld [vmem:[%s3 + $0x70] sm:$0xff]
  %v309 = vld [vmem:[%s3 + $0x78] sm:$0xff]
  %310 = vmatprep.subr.mxu0 0.0
  %311 = vmatpush1.msra.mxu0 %v294
  %312 = vmatprep.subr.mxu0 0.0
  %313 = vmatpush1.msra.mxu0 %v295
  %314 = vmatprep.subr.mxu0 0.0
  %315 = vmatpush1.msra.mxu0 %v296
  %316 = vmatprep.subr.mxu0 0.0
  %317 = vmatpush1.msra.mxu0 %v297
  %318 = vmatprep.subr.mxu0 0.0
  %319 = vmatpush1.msra.mxu0 %v298
  %320 = vmatprep.subr.mxu0 0.0
  %321 = vmatpush1.msra.mxu0 %v299
  %322 = vmatprep.subr.mxu0 0.0
  %323 = vmatpush1.msra.mxu0 %v300
  %324 = vmatprep.subr.mxu0 0.0
  %325 = vmatpush1.msra.mxu0 %v301
  %326 = vmatprep.subr.mxu0 0.0
  %327 = vmatpush1.msra.mxu0 %v302
  %328 = vmatprep.subr.mxu0 0.0
  %329 = vmatpush1.msra.mxu0 %v303
  %330 = vmatprep.subr.mxu0 0.0
  %331 = vmatpush1.msra.mxu0 %v304
  %332 = vmatprep.subr.mxu0 0.0
  %333 = vmatpush1.msra.mxu0 %v305
  %334 = vmatprep.subr.mxu0 0.0
  %335 = vmatpush1.msra.mxu0 %v306
  %336 = vmatprep.subr.mxu0 0.0
  %337 = vmatpush1.msra.mxu0 %v307
  %338 = vmatprep.subr.mxu0 0.0
  %339 = vmatpush1.msra.mxu0 %v308
  %340 = vmatprep.subr.mxu0 0.0
  %341 = vmatpush1.msra.mxu0 %v309
  %342 = vmatprep.subr.mxu0 0.0
  %343 = vmatpush1.msra.mxu0 0.0
  %344 = vmatprep.subr.mxu0 0.0
  %345 = vmatpush1.msra.mxu0 0.0
  %346 = vmatprep.subr.mxu0 0.0
  %347 = vmatpush1.msra.mxu0 0.0
  %348 = vmatprep.subr.mxu0 0.0
  %349 = vmatpush1.msra.mxu0 0.0
  %350 = vmatprep.subr.mxu0 0.0
  %351 = vmatpush1.msra.mxu0 0.0
  %352 = vmatprep.subr.mxu0 0.0
  %353 = vmatpush1.msra.mxu0 0.0
  %354 = vmatprep.subr.mxu0 0.0
  %355 = vmatpush1.msra.mxu0 0.0
  %356 = vmatprep.subr.mxu0 0.0
  %357 = vmatpush1.msra.mxu0 0.0
  %358 = vmatprep.subr.mxu0 0.0
  %359 = vmatpush1.msra.mxu0 0.0
  %360 = vmatprep.subr.mxu0 0.0
  %361 = vmatpush1.msra.mxu0 0.0
  %362 = vmatprep.subr.mxu0 0.0
  %363 = vmatpush1.msra.mxu0 0.0
  %364 = vmatprep.subr.mxu0 0.0
  %365 = vmatpush1.msra.mxu0 0.0
  %366 = vmatprep.subr.mxu0 0.0
  %367 = vmatpush1.msra.mxu0 0.0
  %368 = vmatprep.subr.mxu0 0.0
  %369 = vmatpush1.msra.mxu0 0.0
  %370 = vmatprep.subr.mxu0 0.0
  %371 = vmatpush1.msra.mxu0 0.0
  %372 = vmatprep.subr.mxu0 0.0
  %373 = vmatpush1.msra.mxu0 0.0
  %374 = vmatprep.mubr.f32.mxu0 0.0
  %375 = vmatmul.mubr.f32.gmra.mrb[0].mxu0 %v287
  %v376 = vpop.f32.mrb[0].mxu0
  %v377 = vadd.f32 0.0, %v376
  %v378 = vpop.f32.mrb[0].mxu0
  %379 = vmatprep.mubr.f32.mxu0 0.0
  %380 = vmatmul.mubr.f32.gmra.mrb[0].mxu0 %v289
  %v381 = vpop.f32.mrb[0].mxu0
  %v382 = vadd.f32 0.0, %v381
  %v383 = vpop.f32.mrb[0].mxu0
  %384 = vmatprep.mubr.f32.mxu0 0.0
  %385 = vmatmul.mubr.f32.gmra.mrb[0].mxu0 %v291
  %v386 = vpop.f32.mrb[0].mxu0
  %v387 = vadd.f32 0.0, %v386
  %v388 = vpop.f32.mrb[0].mxu0
  %389 = vmatprep.mubr.f32.mxu0 0.0
  %390 = vmatmul.mubr.f32.gmra.mrb[0].mxu0 %v293
  %v391 = vpop.f32.mrb[0].mxu0
  %v392 = vadd.f32 0.0, %v391
  %v393 = vpop.f32.mrb[0].mxu0
  %394 = vdwg.mxu0
  %v395 = vlog2.pop %v377
  %v396 = vmul.f32 %v395, 0.6931472
  %v397 = vlog2.pop %v382
  %v398 = vmul.f32 %v397, 0.6931472
  %v399 = vlog2.pop %v387
  %v400 = vmul.f32 %v399, 0.6931472
  %v401 = vlog2.pop %v392
  %v402 = vmul.f32 %v401, 0.6931472
  %v403 = vsub.f32 %v282, %v396
  %v404 = vsub.f32 %v283, %v398
  %v405 = vsub.f32 %v284, %v400
  %v406 = vsub.f32 %v285, %v402
  %407 = vst [vmem:[%s4] sm:$0xff] %v403
  %408 = vst [vmem:[%s4 + $0x8] sm:$0xff] %v404
  %409 = vst [vmem:[%s4 + $0x10] sm:$0xff] %v405
  %410 = vst [vmem:[%s4 + $0x18] sm:$0xff] %v406
  // Predicated region
  $region18: #{_graph_dmd_apply_jit.1} parent=0 // pred_check
    _
  $region19: #{_graph_dmd_apply_jit.1} parent=0 // pred_check_branch
    %412 = sbr.rel (0) target = $region21
  $region20: #{_graph_dmd_apply_jit.1} parent=0 // pred_region
    _
  $region21: #{_graph_dmd_apply_jit.1} parent=0 // pred_fallthru
    _
  // Predicated region
  $region22: #{_graph_dmd_apply_jit.1} parent=0 // pred_check
    _
  $region23: #{_graph_dmd_apply_jit.1} parent=0 // pred_check_branch
    %414 = sbr.rel (0) target = $region25
  $region24: #{_graph_dmd_apply_jit.1} parent=0 // pred_region
    _
  $region25: #{_graph_dmd_apply_jit.1} parent=0 // pred_fallthru
    _

</llo_original>
